<compile_context>
chip_gen: v7x
topology: tpu7x:2x2x1
jax: 0.10.0
libtpu: 0.0.40
codegen_flags: <defaults>
</compile_context>

<pallas_src>
import functools

import jax
import jax.numpy as jnp
from jax import lax
from jax.experimental import pallas as pl
from jax.experimental.pallas import tpu as pltpu

NEG_SLOPE = 0.01      # nn.LeakyReLU default
TAU = 0.2             # self.tau in CLTopicModule
INV_TAU = 1.0 / TAU


# ------------------------------ in-kernel math ------------------------------

def _leaky_relu(x):
    return jnp.where(x > 0, x, NEG_SLOPE * x)


def _elu(x):
    return jnp.where(x > 0, x, jnp.exp(x) - 1.0)


def _l2norm(z):
    # rsqrt-and-multiply: rsqrt lands on the EUP slot, frees VALU vs sqrt+div.
    inv = lax.rsqrt(jnp.maximum(jnp.sum(z * z, axis=-1, keepdims=True), 1e-24))
    return z * inv


def _encode(g_bf16, w_enc_ref, b_enc_ref):
    # topic_encoder = MLP(H, H, LeakyReLU); dropout=0 -> identity.
    # g is already bf16 (cast once at pad time); f32 accumulation on the MXU.
    return _leaky_relu(
        jnp.dot(g_bf16, w_enc_ref[...], preferred_element_type=jnp.float32)
        + b_enc_ref[...])


def _project(e, w_p1_ref, b_p1_ref, w_p2_ref, b_p2_ref):
    # ProjectionHead = Linear -> ELU -> Linear
    h = _elu(jnp.dot(e.astype(jnp.bfloat16), w_p1_ref[...],
                     preferred_element_type=jnp.float32) + b_p1_ref[...])
    return jnp.dot(h.astype(jnp.bfloat16), w_p2_ref[...],
                   preferred_element_type=jnp.float32) + b_p2_ref[...]


# --------------------------------- kernels ----------------------------------

def z2_kernel(g2_ref, w_enc_ref, b_enc_ref, w_p1_ref, b_p1_ref,
              w_p2_ref, b_p2_ref, z2t_ref):
    """g2 ("detached") branch: encoder + projection + L2-normalize.

    Stored transposed ([H_pad, TN]) and in bf16: one XLU transpose per tile
    here buys plain NN MXU matmuls in pass 2 and halves z2 HBM/VMEM traffic.
    """
    e2 = _encode(g2_ref[...], w_enc_ref, b_enc_ref)
    z2n = _l2norm(_project(e2, w_p1_ref, b_p1_ref, w_p2_ref, b_p2_ref))
    z2t_ref[...] = z2n.T.astype(jnp.bfloat16)


def ecl_main_kernel(g1_ref, z2t_ref,
                    w_enc_ref, b_enc_ref, w_p1_ref, b_p1_ref,
                    w_p2_ref, b_p2_ref, w_fc_row_ref, b_fc_ref,
                    emb_ref, aux_ref,
                    z1n_sc, denom_sc, pos_sc, outv_sc,
                    *, tk, n_valid, n_pad):
    """g1 branch + streamed InfoNCE (key blocks on grid axis 1) + fc_out."""
    k = pl.program_id(1)

    @pl.when(k == 0)
    def _():
        # Per-row-tile work: encoder, projection, fc_out, accumulator init.
        e1 = _encode(g1_ref[...], w_enc_ref, b_enc_ref)
        z1n = _l2norm(_project(e1, w_p1_ref, b_p1_ref, w_p2_ref, b_p2_ref))
        z1n_sc[...] = z1n.astype(jnp.bfloat16)
        emb_ref[...] = e1                                  # topic_embs = e1
        # fc_out(H->1) on the VPU (row-vector multiply + row-sum): a 1-column
        # MXU matmul would use 1/128 of the lanes.
        fc = jnp.sum(e1 * w_fc_row_ref[...], axis=-1, keepdims=True) + b_fc_ref[...]
        outv_sc[...] = _leaky_relu(fc)
        denom_sc[...] = jnp.zeros_like(denom_sc)
        pos_sc[...] = jnp.zeros_like(pos_sc)

    # Streamed key block: plain NN matmul against the transposed bf16 keys.
    sim = jnp.dot(z1n_sc[...], z2t_ref[...],
                  preferred_element_type=jnp.float32) * INV_TAU     # [TN, TK]

    if n_pad != n_valid:
        # Mask padded key columns out of the softmax denominator.
        col = lax.broadcasted_iota(jnp.int32, sim.shape, 1) + k * tk
        sim = jnp.where(col < n_valid, sim, -1e30)

    # sim/tau bounded in [-5, 5] (L2-normalized inputs, tau=0.2): running
    # sum-exp needs no max-stabilizer.  (exp over [TN, N] keys is the EUP
    # roofline on v6e/v7x for small H.)
    denom_sc[...] += jnp.sum(jnp.exp(sim), axis=-1, keepdims=True)

    @pl.when(k == pl.program_id(0))
    def _():
        # TK == TN: positives of this query tile are the diagonal of the
        # aligned key block (same bf16 MXU product as the denominator).
        r = lax.broadcasted_iota(jnp.int32, sim.shape, 0)
        c = lax.broadcasted_iota(jnp.int32, sim.shape, 1)
        pos_sc[...] = jnp.sum(jnp.where(r == c, sim, 0.0), axis=-1, keepdims=True)

    @pl.when(k == pl.num_programs(1) - 1)
    def _():
        loss_rows = jnp.log(denom_sc[...]) - pos_sc[...]
        # Lane-dense aux output: col 0 = fc_out value, col 1 = per-row loss.
        colw = lax.broadcasted_iota(jnp.int32, aux_ref.shape, 1)
        aux_ref[...] = jnp.where(colw == 0, outv_sc[...],
                                 jnp.where(colw == 1, loss_rows, 0.0))


def ecl_fused_kernel(g1_ref, g2_ref, w_enc_ref, b_enc_ref,
                     w_p1_ref, b_p1_ref, w_p2_ref, b_p2_ref,
                     w_fc_row_ref, b_fc_ref, emb_ref, aux_ref,
                     *, n_valid, n_pad):
    """Small-N path: both branches + InfoNCE + fc_out in one kernel launch."""
    e1 = _encode(g1_ref[...], w_enc_ref, b_enc_ref)
    z1n = _l2norm(_project(e1, w_p1_ref, b_p1_ref, w_p2_ref, b_p2_ref))
    e2 = _encode(g2_ref[...], w_enc_ref, b_enc_ref)
    z2n = _l2norm(_project(e2, w_p1_ref, b_p1_ref, w_p2_ref, b_p2_ref))

    z2t = z2n.T.astype(jnp.bfloat16)                       # one-time transpose
    sim = jnp.dot(z1n.astype(jnp.bfloat16), z2t,
                  preferred_element_type=jnp.float32) * INV_TAU   # [Np, Np]
    if n_pad != n_valid:
        colk = lax.broadcasted_iota(jnp.int32, sim.shape, 1)
        sim = jnp.where(colk < n_valid, sim, -1e30)

    r = lax.broadcasted_iota(jnp.int32, sim.shape, 0)
    c = lax.broadcasted_iota(jnp.int32, sim.shape, 1)
    pos = jnp.sum(jnp.where(r == c, sim, 0.0), axis=-1, keepdims=True)
    lse = jnp.log(jnp.sum(jnp.exp(sim), axis=-1, keepdims=True))
    loss_rows = lse - pos

    emb_ref[...] = e1
    fc = jnp.sum(e1 * w_fc_row_ref[...], axis=-1, keepdims=True) + b_fc_ref[...]
    out_val = _leaky_relu(fc)
    colw = lax.broadcasted_iota(jnp.int32, aux_ref.shape, 1)
    aux_ref[...] = jnp.where(colw == 0, out_val,
                             jnp.where(colw == 1, loss_rows, 0.0))


# --------------------------------- wrappers ----------------------------------

def _round_up(x, m):
    return (x + m - 1) // m * m


def _pad2(x, rows, cols):
    return jnp.pad(x, ((0, rows - x.shape[0]), (0, cols - x.shape[1])))


def _vmem_cap():
    # Generation-aware: ~85% of physical VMEM (v5e/v6e 128 MiB, v7x 64 MiB).
    try:
        return int(0.85 * pltpu.get_tpu_info().vmem_capacity_bytes)
    except Exception:
        return 48 * 1024 * 1024


def _const_spec(shape, grid_rank, single_buffer):
    nd = len(shape)
    if grid_rank == 1:
        idx = lambda i, _nd=nd: (0,) * _nd
    else:
        idx = lambda i, k, _nd=nd: (0,) * _nd
    if single_buffer:
        # Constant-index-map input: its block never changes across the grid,
        # so one VMEM buffer suffices (default double-buffering just doubles
        # its footprint).
        return pl.BlockSpec(shape, idx, pipeline_mode=pl.Buffered(1))
    return pl.BlockSpec(shape, idx)


def _weight_bytes(wp):
    (w_enc_p, b_enc_p, w_p1_p, b_p1_p, w_p2_p, b_p2_p, w_fc_row, b_fc_p) = wp
    wbytes = (w_enc_p.size + w_p1_p.size + w_p2_p.size) * 2          # bf16
    bbytes = (b_enc_p.size + b_p1_p.size + b_p2_p.size
              + w_fc_row.size + b_fc_p.size) * 4                     # f32
    return wbytes + bbytes


def _forward_fused(g1p, g2p, wp, n_valid, n_pad, h_pad, cap):
    (w_enc_p, b_enc_p, w_p1_p, b_p1_p, w_p2_p, b_p2_p, w_fc_row, b_fc_p) = wp
    kernel = functools.partial(ecl_fused_kernel, n_valid=n_valid, n_pad=n_pad)
    in_arrays = (g1p, g2p, w_enc_p, b_enc_p, w_p1_p, b_p1_p, w_p2_p, b_p2_p,
                 w_fc_row, b_fc_p)
    in_specs = [_const_spec(a.shape, 1, False) for a in in_arrays]

    vmem = int(4 * n_pad * h_pad * 2 + 2 * _weight_bytes(wp)
               + 2 * n_pad * h_pad * 4 + 2 * n_pad * 128 * 4
               + 10 * n_pad * h_pad * 4 + 3 * n_pad * n_pad * 4 + (4 << 20))
    vmem = int(min(cap, max(16 << 20, vmem)))

    emb, aux = pl.pallas_call(
        kernel,
        grid=(1,),
        in_specs=in_specs,
        out_specs=(pl.BlockSpec((n_pad, h_pad), lambda i: (0, 0)),
                   pl.BlockSpec((n_pad, 128), lambda i: (0, 0))),
        out_shape=(jax.ShapeDtypeStruct((n_pad, h_pad), jnp.float32),
                   jax.ShapeDtypeStruct((n_pad, 128), jnp.float32)),
        compiler_params=pltpu.CompilerParams(
            dimension_semantics=("arbitrary",), vmem_limit_bytes=vmem),
    )(*in_arrays)
    return emb, aux


def _forward_two_pass(g1p, g2p, wp, n_valid, n_pad, h_pad, tn, cap,
                      single_buffer):
    (w_enc_p, b_enc_p, w_p1_p, b_p1_p, w_p2_p, b_p2_p, w_fc_row, b_fc_p) = wp
    n_blocks = n_pad // tn
    tk = tn
    n_kblocks = n_pad // tk
    wmult = 1 if single_buffer else 2
    wb = _weight_bytes(wp)

    # ---- Pass 1: z2t = normalize(proj(encoder(g2))).T  (bf16, [H_pad, N_pad])
    vmem1 = int(2 * tn * h_pad * 2            # g2 block (double-buffered, bf16)
                + wmult * wb
                + 2 * h_pad * tn * 2          # z2t output block (bf16)
                + 8 * tn * h_pad * 4          # f32 temporaries
                + (4 << 20))
    vmem1 = int(min(cap, max(16 << 20, vmem1)))

    wspecs1 = [_const_spec(a.shape, 1, single_buffer)
               for a in (w_enc_p, b_enc_p, w_p1_p, b_p1_p, w_p2_p, b_p2_p)]
    z2t = pl.pallas_call(
        z2_kernel,
        grid=(n_blocks,),
        in_specs=[pl.BlockSpec((tn, h_pad), lambda i: (i, 0))] + wspecs1,
        out_specs=pl.BlockSpec((h_pad, tn), lambda i: (0, i)),
        out_shape=jax.ShapeDtypeStruct((h_pad, n_pad), jnp.bfloat16),
        compiler_params=pltpu.CompilerParams(
            dimension_semantics=("parallel",), vmem_limit_bytes=vmem1),
    )(g2p, w_enc_p, b_enc_p, w_p1_p, b_p1_p, w_p2_p, b_p2_p)

    # ---- Pass 2: g1 branch + streamed InfoNCE + fc_out.
    vmem2 = int(2 * tn * h_pad * 2            # g1 block (bf16)
                + 2 * h_pad * tk * 2          # streamed key block (bf16)
                + wmult * wb
                + 2 * tn * h_pad * 4          # emb output block
                + 2 * tn * 128 * 4            # aux output block
                + tn * h_pad * 2 + 3 * tn * 128 * 4   # scratch
                + 8 * tn * h_pad * 4 + 3 * tn * tk * 4
                + (4 << 20))
    vmem2 = int(min(cap, max(16 << 20, vmem2)))

    kernel2 = functools.partial(ecl_main_kernel, tk=tk,
                                n_valid=n_valid, n_pad=n_pad)
    wspecs2 = [_const_spec(a.shape, 2, single_buffer)
               for a in (w_enc_p, b_enc_p, w_p1_p, b_p1_p, w_p2_p, b_p2_p,
                         w_fc_row, b_fc_p)]
    emb, aux = pl.pallas_call(
        kernel2,
        grid=(n_blocks, n_kblocks),
        in_specs=[pl.BlockSpec((tn, h_pad), lambda i, k: (i, 0)),
                  pl.BlockSpec((h_pad, tk), lambda i, k: (0, k))] + wspecs2,
        out_specs=(pl.BlockSpec((tn, h_pad), lambda i, k: (i, 0)),
                   pl.BlockSpec((tn, 128), lambda i, k: (i, 0))),
        out_shape=(jax.ShapeDtypeStruct((n_pad, h_pad), jnp.float32),
                   jax.ShapeDtypeStruct((n_pad, 128), jnp.float32)),
        scratch_shapes=[pltpu.VMEM((tn, h_pad), jnp.bfloat16),   # z1n
                        pltpu.VMEM((tn, 1), jnp.float32),        # running sum-exp
                        pltpu.VMEM((tn, 1), jnp.float32),        # positives
                        pltpu.VMEM((tn, 1), jnp.float32)],       # fc_out values
        compiler_params=pltpu.CompilerParams(
            dimension_semantics=("parallel", "arbitrary"),
            vmem_limit_bytes=vmem2),
    )(g1p, z2t, w_enc_p, b_enc_p, w_p1_p, b_p1_p, w_p2_p, b_p2_p,
      w_fc_row, b_fc_p)
    return emb, aux


def ecl_topic_forward(g1, g2, params, *, tn=128):
    """g1, g2: [N, H] f32. Returns (out [N,1], topic_embs [N,H], cl_loss scalar).

    tn = row tile (multiple of 128). 128 suits v5e/v7x; 256 can help on v6e.
    """
    N, H = g1.shape
    w_enc, b_enc, w_fc, b_fc, w_p1, b_p1, w_p2, b_p2 = params
    tn = max(128, _round_up(tn, 128))
    h_pad = _round_up(H, 128)
    cap = _vmem_cap()

    # Weights pre-cast to bf16 once (MXU-native; halves weight DMA); biases f32.
    wp = (
        _pad2(w_enc, h_pad, h_pad).astype(jnp.bfloat16),
        _pad2(b_enc, 1, h_pad).astype(jnp.float32),
        _pad2(w_p1, h_pad, h_pad).astype(jnp.bfloat16),
        _pad2(b_p1, 1, h_pad).astype(jnp.float32),
        _pad2(w_p2, h_pad, h_pad).astype(jnp.bfloat16),
        _pad2(b_p2, 1, h_pad).astype(jnp.float32),
        _pad2(w_fc.T, 1, h_pad).astype(jnp.float32),   # fc row-vector (VPU path)
        b_fc.reshape(1, 1).astype(jnp.float32),
    )

    if N <= tn:
        # Small N: one fused kernel -- no z2 HBM round trip, no second launch.
        n_pad = _round_up(N, 16)                       # bf16 sublane tile
        g1p = _pad2(g1, n_pad, h_pad).astype(jnp.bfloat16)
        g2p = _pad2(g2, n_pad, h_pad).astype(jnp.bfloat16)
        emb, aux = _forward_fused(g1p, g2p, wp, N, n_pad, h_pad, cap)
    else:
        # >= 2 row blocks here, so the "parallel" axis spans both v7x cores.
        n_pad = _round_up(N, tn)
        g1p = _pad2(g1, n_pad, h_pad).astype(jnp.bfloat16)
        g2p = _pad2(g2, n_pad, h_pad).astype(jnp.bfloat16)
        try:
            emb, aux = _forward_two_pass(g1p, g2p, wp, N, n_pad, h_pad, tn,
                                         cap, single_buffer=True)
        except Exception:
            # Fallback for jax builds rejecting single-buffer pipeline_mode.
            emb, aux = _forward_two_pass(g1p, g2p, wp, N, n_pad, h_pad, tn,
                                         cap, single_buffer=False)

    out = aux[:N, 0:1]
    topic_embs = emb[:N, :H]
    cl_loss = jnp.sum(aux[:N, 1]) / jnp.float32(N)
    return out, topic_embs, cl_loss


# ----------------------------- reference & demo ------------------------------

def init_params(key, hidden_dim):
    ks = jax.random.split(key, 8)
    scale = 0.1
    w_enc = scale * jax.random.normal(ks[0], (hidden_dim, hidden_dim), jnp.float32)
    b_enc = scale * jax.random.normal(ks[1], (1, hidden_dim), jnp.float32)
    w_fc = scale * jax.random.normal(ks[2], (hidden_dim, 1), jnp.float32)
    b_fc = scale * jax.random.normal(ks[3], (1, 1), jnp.float32)
    w_p1 = scale * jax.random.normal(ks[4], (hidden_dim, hidden_dim), jnp.float32)
    b_p1 = scale * jax.random.normal(ks[5], (1, hidden_dim), jnp.float32)
    w_p2 = scale * jax.random.normal(ks[6], (hidden_dim, hidden_dim), jnp.float32)
    b_p2 = scale * jax.random.normal(ks[7], (1, hidden_dim), jnp.float32)
    return (w_enc, b_enc, w_fc, b_fc, w_p1, b_p1, w_p2, b_p2)


def _reference_forward(g1, g2, params):
    """Pure-JAX f32 reference of the (assumed) module semantics."""
    w_enc, b_enc, w_fc, b_fc, w_p1, b_p1, w_p2, b_p2 = params
    leaky = lambda x: jnp.where(x > 0, x, NEG_SLOPE * x)
    elu = lambda x: jnp.where(x > 0, x, jnp.exp(x) - 1.0)
    encode = lambda x: leaky(x @ w_enc + b_enc)
    project = lambda x: elu(x @ w_p1 + b_p1) @ w_p2 + b_p2
    e1, e2 = encode(g1), encode(g2)
    z1, z2 = project(e1), project(e2)
    z1n = z1 / jnp.linalg.norm(z1, axis=-1, keepdims=True)
    z2n = z2 / jnp.linalg.norm(z2, axis=-1, keepdims=True)
    sim = (z1n @ z2n.T) * INV_TAU
    cl_loss = jnp.mean(jax.nn.logsumexp(sim, axis=-1) - jnp.diagonal(sim))
    out = leaky(e1 @ w_fc + b_fc)
    return out, e1, cl_loss


def _run_case(n, h, key):
    k1, k2, kp = jax.random.split(key, 3)
    g1 = jax.random.normal(k1, (n, h), jnp.float32)
    g2 = jax.random.normal(k2, (n, h), jnp.float32)
    params = init_params(kp, h)

    out, topic_embs, cl_loss = ecl_topic_forward(g1, g2, params)
    jax.block_until_ready((out, topic_embs, cl_loss))
    assert out.shape == (n, 1)
    assert topic_embs.shape == (n, h)
    assert cl_loss.shape == ()

    r_out, r_embs, r_loss = _reference_forward(g1, g2, params)
    # Loose tolerance: kernel uses bf16 MXU operands with f32 accumulation.
    for name, got, want in (("out", out, r_out),
                            ("topic_embs", topic_embs, r_embs),
                            ("cl_loss", cl_loss, r_loss)):
        err = float(jnp.max(jnp.abs(got - want)))
        ref = float(jnp.max(jnp.abs(want)))
        assert err <= 0.05 * (1.0 + ref), f"{name}: max|err|={err}, ref={ref}"


if __name__ == "__main__":
    root = jax.random.PRNGKey(0)
    k_small, k_large = jax.random.split(root)
    # Small case (module scale: 8 snapshots, hidden_dim=32) -> fused kernel path.
    _run_case(8, 32, k_small)
    # Larger case -> two-pass, K-blocked streaming path (exercises padding/mask).
    _run_case(300, 96, k_large)
    print("KERNEL_OK")
</pallas_src>

<mosaic_0001>
module attributes {stable_mosaic.version = 11 : i64} {
  func.func @ecl_fused_kernel(%arg0: i32, %arg1: memref<16x128xbf16, #tpu.memory_space<vmem>>, %arg2: memref<16x128xbf16, #tpu.memory_space<vmem>>, %arg3: memref<128x128xbf16, #tpu.memory_space<vmem>>, %arg4: memref<1x128xf32, #tpu.memory_space<vmem>>, %arg5: memref<128x128xbf16, #tpu.memory_space<vmem>>, %arg6: memref<1x128xf32, #tpu.memory_space<vmem>>, %arg7: memref<128x128xbf16, #tpu.memory_space<vmem>>, %arg8: memref<1x128xf32, #tpu.memory_space<vmem>>, %arg9: memref<1x128xf32, #tpu.memory_space<vmem>>, %arg10: memref<1x1xf32, #tpu.memory_space<vmem>>, %arg11: memref<16x128xf32, #tpu.memory_space<vmem>>, %arg12: memref<16x128xf32, #tpu.memory_space<vmem>>) attributes {dimension_semantics = [#tpu.dimension_semantics<arbitrary>], iteration_bounds = array<i64: 1>, scalar_prefetch = 0 : i64, scratch_operands = 0 : i64, tpu.core_type = #tpu.core_type<tc>, window_params = [{pipeline_mode = #tpu.pipeline_mode<synchronous>, transform_indices = @transform_0, window_bounds = array<i64: 16, 128>}, {pipeline_mode = #tpu.pipeline_mode<synchronous>, transform_indices = @transform_1, window_bounds = array<i64: 16, 128>}, {pipeline_mode = #tpu.pipeline_mode<synchronous>, transform_indices = @transform_2, window_bounds = array<i64: 128, 128>}, {pipeline_mode = #tpu.pipeline_mode<synchronous>, transform_indices = @transform_3, window_bounds = array<i64: 1, 128>}, {pipeline_mode = #tpu.pipeline_mode<synchronous>, transform_indices = @transform_4, window_bounds = array<i64: 128, 128>}, {pipeline_mode = #tpu.pipeline_mode<synchronous>, transform_indices = @transform_5, window_bounds = array<i64: 1, 128>}, {pipeline_mode = #tpu.pipeline_mode<synchronous>, transform_indices = @transform_6, window_bounds = array<i64: 128, 128>}, {pipeline_mode = #tpu.pipeline_mode<synchronous>, transform_indices = @transform_7, window_bounds = array<i64: 1, 128>}, {pipeline_mode = #tpu.pipeline_mode<synchronous>, transform_indices = @transform_8, window_bounds = array<i64: 1, 128>}, {pipeline_mode = #tpu.pipeline_mode<synchronous>, transform_indices = @transform_9, window_bounds = array<i64: 1, 1>}, {pipeline_mode = #tpu.pipeline_mode<synchronous>, transform_indices = @transform_10, window_bounds = array<i64: 16, 128>}, {pipeline_mode = #tpu.pipeline_mode<synchronous>, transform_indices = @transform_11, window_bounds = array<i64: 16, 128>}]} {
    %c0 = arith.constant 0 : index
    %c0_0 = arith.constant 0 : index
    %0 = vector.load %arg1[%c0, %c0_0] : memref<16x128xbf16, #tpu.memory_space<vmem>>, vector<16x128xbf16>
    %c0_1 = arith.constant 0 : index
    %c0_2 = arith.constant 0 : index
    %1 = vector.load %arg3[%c0_1, %c0_2] : memref<128x128xbf16, #tpu.memory_space<vmem>>, vector<128x128xbf16>
    %cst = arith.constant dense<0.000000e+00> : vector<16x128xf32>
    %2 = tpu.matmul %0, %1, %cst {dimension_numbers = #tpu.dot_dimension_numbers<[1], [0], [0], [1], [0, 0, 1, 1], [], []>} : vector<16x128xbf16>, vector<128x128xbf16>, vector<16x128xf32> -> vector<16x128xf32>
    %c0_3 = arith.constant 0 : index
    %c0_4 = arith.constant 0 : index
    %3 = vector.load %arg4[%c0_3, %c0_4] : memref<1x128xf32, #tpu.memory_space<vmem>>, vector<1x128xf32>
    %4 = vector.broadcast %3 : vector<1x128xf32> to vector<16x128xf32>
    %5 = arith.addf %2, %4 : vector<16x128xf32>
    %cst_5 = arith.constant 0.000000e+00 : f32
    %6 = vector.broadcast %cst_5 : f32 to vector<16x128xf32>
    %7 = arith.cmpf ogt, %5, %6 : vector<16x128xf32>
    %cst_6 = arith.constant 0.00999999977 : f32
    %8 = vector.broadcast %cst_6 : f32 to vector<16x128xf32>
    %9 = arith.mulf %8, %5 : vector<16x128xf32>
    %10 = arith.select %7, %5, %9 : vector<16x128xi1>, vector<16x128xf32>
    %11 = arith.truncf %10 : vector<16x128xf32> to vector<16x128xbf16>
    %c0_7 = arith.constant 0 : index
    %c0_8 = arith.constant 0 : index
    %12 = vector.load %arg5[%c0_7, %c0_8] : memref<128x128xbf16, #tpu.memory_space<vmem>>, vector<128x128xbf16>
    %cst_9 = arith.constant dense<0.000000e+00> : vector<16x128xf32>
    %13 = tpu.matmul %11, %12, %cst_9 {dimension_numbers = #tpu.dot_dimension_numbers<[1], [0], [0], [1], [0, 0, 1, 1], [], []>} : vector<16x128xbf16>, vector<128x128xbf16>, vector<16x128xf32> -> vector<16x128xf32>
    %c0_10 = arith.constant 0 : index
    %c0_11 = arith.constant 0 : index
    %14 = vector.load %arg6[%c0_10, %c0_11] : memref<1x128xf32, #tpu.memory_space<vmem>>, vector<1x128xf32>
    %15 = vector.broadcast %14 : vector<1x128xf32> to vector<16x128xf32>
    %16 = arith.addf %13, %15 : vector<16x128xf32>
    %cst_12 = arith.constant 0.000000e+00 : f32
    %17 = vector.broadcast %cst_12 : f32 to vector<16x128xf32>
    %18 = arith.cmpf ogt, %16, %17 : vector<16x128xf32>
    %19 = math.exp %16 : vector<16x128xf32>
    %cst_13 = arith.constant 1.000000e+00 : f32
    %20 = vector.broadcast %cst_13 : f32 to vector<16x128xf32>
    %21 = arith.subf %19, %20 : vector<16x128xf32>
    %22 = arith.select %18, %16, %21 : vector<16x128xi1>, vector<16x128xf32>
    %23 = arith.truncf %22 : vector<16x128xf32> to vector<16x128xbf16>
    %c0_14 = arith.constant 0 : index
    %c0_15 = arith.constant 0 : index
    %24 = vector.load %arg7[%c0_14, %c0_15] : memref<128x128xbf16, #tpu.memory_space<vmem>>, vector<128x128xbf16>
    %cst_16 = arith.constant dense<0.000000e+00> : vector<16x128xf32>
    %25 = tpu.matmul %23, %24, %cst_16 {dimension_numbers = #tpu.dot_dimension_numbers<[1], [0], [0], [1], [0, 0, 1, 1], [], []>} : vector<16x128xbf16>, vector<128x128xbf16>, vector<16x128xf32> -> vector<16x128xf32>
    %c0_17 = arith.constant 0 : index
    %c0_18 = arith.constant 0 : index
    %26 = vector.load %arg8[%c0_17, %c0_18] : memref<1x128xf32, #tpu.memory_space<vmem>>, vector<1x128xf32>
    %27 = vector.broadcast %26 : vector<1x128xf32> to vector<16x128xf32>
    %28 = arith.addf %25, %27 : vector<16x128xf32>
    %29 = arith.mulf %28, %28 : vector<16x128xf32>
    %cst_19 = arith.constant dense<0.000000e+00> : vector<16xf32>
    %30 = vector.multi_reduction <add>, %29, %cst_19 [1] : vector<16x128xf32> to vector<16xf32>
    %31 = vector.shape_cast %30 : vector<16xf32> to vector<16x1xf32>
    %cst_20 = arith.constant 1.000000e-24 : f32
    %32 = vector.broadcast %cst_20 : f32 to vector<16x1xf32>
    %33 = arith.maximumf %31, %32 : vector<16x1xf32>
    %34 = math.rsqrt %33 : vector<16x1xf32>
    %35 = vector.broadcast %34 : vector<16x1xf32> to vector<16x128xf32>
    %36 = arith.mulf %28, %35 : vector<16x128xf32>
    %c0_21 = arith.constant 0 : index
    %c0_22 = arith.constant 0 : index
    %37 = vector.load %arg2[%c0_21, %c0_22] : memref<16x128xbf16, #tpu.memory_space<vmem>>, vector<16x128xbf16>
    %c0_23 = arith.constant 0 : index
    %c0_24 = arith.constant 0 : index
    %38 = vector.load %arg3[%c0_23, %c0_24] : memref<128x128xbf16, #tpu.memory_space<vmem>>, vector<128x128xbf16>
    %cst_25 = arith.constant dense<0.000000e+00> : vector<16x128xf32>
    %39 = tpu.matmul %37, %38, %cst_25 {dimension_numbers = #tpu.dot_dimension_numbers<[1], [0], [0], [1], [0, 0, 1, 1], [], []>} : vector<16x128xbf16>, vector<128x128xbf16>, vector<16x128xf32> -> vector<16x128xf32>
    %c0_26 = arith.constant 0 : index
    %c0_27 = arith.constant 0 : index
    %40 = vector.load %arg4[%c0_26, %c0_27] : memref<1x128xf32, #tpu.memory_space<vmem>>, vector<1x128xf32>
    %41 = vector.broadcast %40 : vector<1x128xf32> to vector<16x128xf32>
    %42 = arith.addf %39, %41 : vector<16x128xf32>
    %cst_28 = arith.constant 0.000000e+00 : f32
    %43 = vector.broadcast %cst_28 : f32 to vector<16x128xf32>
    %44 = arith.cmpf ogt, %42, %43 : vector<16x128xf32>
    %cst_29 = arith.constant 0.00999999977 : f32
    %45 = vector.broadcast %cst_29 : f32 to vector<16x128xf32>
    %46 = arith.mulf %45, %42 : vector<16x128xf32>
    %47 = arith.select %44, %42, %46 : vector<16x128xi1>, vector<16x128xf32>
    %48 = arith.truncf %47 : vector<16x128xf32> to vector<16x128xbf16>
    %c0_30 = arith.constant 0 : index
    %c0_31 = arith.constant 0 : index
    %49 = vector.load %arg5[%c0_30, %c0_31] : memref<128x128xbf16, #tpu.memory_space<vmem>>, vector<128x128xbf16>
    %cst_32 = arith.constant dense<0.000000e+00> : vector<16x128xf32>
    %50 = tpu.matmul %48, %49, %cst_32 {dimension_numbers = #tpu.dot_dimension_numbers<[1], [0], [0], [1], [0, 0, 1, 1], [], []>} : vector<16x128xbf16>, vector<128x128xbf16>, vector<16x128xf32> -> vector<16x128xf32>
    %c0_33 = arith.constant 0 : index
    %c0_34 = arith.constant 0 : index
    %51 = vector.load %arg6[%c0_33, %c0_34] : memref<1x128xf32, #tpu.memory_space<vmem>>, vector<1x128xf32>
    %52 = vector.broadcast %51 : vector<1x128xf32> to vector<16x128xf32>
    %53 = arith.addf %50, %52 : vector<16x128xf32>
    %cst_35 = arith.constant 0.000000e+00 : f32
    %54 = vector.broadcast %cst_35 : f32 to vector<16x128xf32>
    %55 = arith.cmpf ogt, %53, %54 : vector<16x128xf32>
    %56 = math.exp %53 : vector<16x128xf32>
    %cst_36 = arith.constant 1.000000e+00 : f32
    %57 = vector.broadcast %cst_36 : f32 to vector<16x128xf32>
    %58 = arith.subf %56, %57 : vector<16x128xf32>
    %59 = arith.select %55, %53, %58 : vector<16x128xi1>, vector<16x128xf32>
    %60 = arith.truncf %59 : vector<16x128xf32> to vector<16x128xbf16>
    %c0_37 = arith.constant 0 : index
    %c0_38 = arith.constant 0 : index
    %61 = vector.load %arg7[%c0_37, %c0_38] : memref<128x128xbf16, #tpu.memory_space<vmem>>, vector<128x128xbf16>
    %cst_39 = arith.constant dense<0.000000e+00> : vector<16x128xf32>
    %62 = tpu.matmul %60, %61, %cst_39 {dimension_numbers = #tpu.dot_dimension_numbers<[1], [0], [0], [1], [0, 0, 1, 1], [], []>} : vector<16x128xbf16>, vector<128x128xbf16>, vector<16x128xf32> -> vector<16x128xf32>
    %c0_40 = arith.constant 0 : index
    %c0_41 = arith.constant 0 : index
    %63 = vector.load %arg8[%c0_40, %c0_41] : memref<1x128xf32, #tpu.memory_space<vmem>>, vector<1x128xf32>
    %64 = vector.broadcast %63 : vector<1x128xf32> to vector<16x128xf32>
    %65 = arith.addf %62, %64 : vector<16x128xf32>
    %66 = arith.mulf %65, %65 : vector<16x128xf32>
    %cst_42 = arith.constant dense<0.000000e+00> : vector<16xf32>
    %67 = vector.multi_reduction <add>, %66, %cst_42 [1] : vector<16x128xf32> to vector<16xf32>
    %68 = vector.shape_cast %67 : vector<16xf32> to vector<16x1xf32>
    %cst_43 = arith.constant 1.000000e-24 : f32
    %69 = vector.broadcast %cst_43 : f32 to vector<16x1xf32>
    %70 = arith.maximumf %68, %69 : vector<16x1xf32>
    %71 = math.rsqrt %70 : vector<16x1xf32>
    %72 = vector.broadcast %71 : vector<16x1xf32> to vector<16x128xf32>
    %73 = arith.mulf %65, %72 : vector<16x128xf32>
    %74 = tpu.transpose %73, [1, 0] : vector<16x128xf32> -> vector<128x16xf32>
    %75 = arith.truncf %74 : vector<128x16xf32> to vector<128x16xbf16>
    %76 = arith.truncf %36 : vector<16x128xf32> to vector<16x128xbf16>
    %cst_44 = arith.constant dense<0.000000e+00> : vector<16x16xf32>
    %77 = tpu.matmul %76, %75, %cst_44 {dimension_numbers = #tpu.dot_dimension_numbers<[1], [0], [0], [1], [0, 0, 1, 1], [], []>} : vector<16x128xbf16>, vector<128x16xbf16>, vector<16x16xf32> -> vector<16x16xf32>
    %cst_45 = arith.constant 5.000000e+00 : f32
    %78 = vector.broadcast %cst_45 : f32 to vector<16x16xf32>
    %79 = arith.mulf %77, %78 : vector<16x16xf32>
    %80 = tpu.iota {dimensions = array<i32: 1>} : vector<16x16xi32>
    %c8_i32 = arith.constant 8 : i32
    %81 = vector.broadcast %c8_i32 : i32 to vector<16x16xi32>
    %82 = arith.cmpi slt, %80, %81 : vector<16x16xi32>
    %cst_46 = arith.constant -1.000000e+30 : f32
    %83 = vector.broadcast %cst_46 : f32 to vector<16x16xf32>
    %84 = arith.select %82, %79, %83 : vector<16x16xi1>, vector<16x16xf32>
    %85 = tpu.iota {dimensions = array<i32: 0>} : vector<16x16xi32>
    %86 = tpu.iota {dimensions = array<i32: 1>} : vector<16x16xi32>
    %87 = arith.cmpi eq, %85, %86 : vector<16x16xi32>
    %cst_47 = arith.constant 0.000000e+00 : f32
    %88 = vector.broadcast %cst_47 : f32 to vector<16x16xf32>
    %89 = arith.select %87, %84, %88 : vector<16x16xi1>, vector<16x16xf32>
    %cst_48 = arith.constant dense<0.000000e+00> : vector<16xf32>
    %90 = vector.multi_reduction <add>, %89, %cst_48 [1] : vector<16x16xf32> to vector<16xf32>
    %91 = vector.shape_cast %90 : vector<16xf32> to vector<16x1xf32>
    %92 = math.exp %84 : vector<16x16xf32>
    %cst_49 = arith.constant dense<0.000000e+00> : vector<16xf32>
    %93 = vector.multi_reduction <add>, %92, %cst_49 [1] : vector<16x16xf32> to vector<16xf32>
    %94 = vector.shape_cast %93 : vector<16xf32> to vector<16x1xf32>
    %95 = math.log %94 : vector<16x1xf32>
    %96 = arith.subf %95, %91 : vector<16x1xf32>
    %c0_50 = arith.constant 0 : index
    %c0_51 = arith.constant 0 : index
    %97 = vector.load %arg11[%c0_50, %c0_51] : memref<16x128xf32, #tpu.memory_space<vmem>>, vector<16x128xf32>
    tpu.vector_store %arg11[%c0_50, %c0_51], %10 {strides = array<i32>} : memref<16x128xf32, #tpu.memory_space<vmem>>, vector<16x128xf32>,
    %c0_52 = arith.constant 0 : index
    %c0_53 = arith.constant 0 : index
    %98 = vector.load %arg9[%c0_52, %c0_53] : memref<1x128xf32, #tpu.memory_space<vmem>>, vector<1x128xf32>
    %99 = vector.broadcast %98 : vector<1x128xf32> to vector<16x128xf32>
    %100 = arith.mulf %10, %99 : vector<16x128xf32>
    %cst_54 = arith.constant dense<0.000000e+00> : vector<16xf32>
    %101 = vector.multi_reduction <add>, %100, %cst_54 [1] : vector<16x128xf32> to vector<16xf32>
    %102 = vector.shape_cast %101 : vector<16xf32> to vector<16x1xf32>
    %c0_55 = arith.constant 0 : index
    %c0_56 = arith.constant 0 : index
    %103 = vector.load %arg10[%c0_55, %c0_56] : memref<1x1xf32, #tpu.memory_space<vmem>>, vector<1x1xf32>
    %104 = vector.broadcast %103 : vector<1x1xf32> to vector<16x1xf32>
    %105 = arith.addf %102, %104 : vector<16x1xf32>
    %cst_57 = arith.constant 0.000000e+00 : f32
    %106 = vector.broadcast %cst_57 : f32 to vector<16x1xf32>
    %107 = arith.cmpf ogt, %105, %106 : vector<16x1xf32>
    %cst_58 = arith.constant 0.00999999977 : f32
    %108 = vector.broadcast %cst_58 : f32 to vector<16x1xf32>
    %109 = arith.mulf %108, %105 : vector<16x1xf32>
    %110 = arith.select %107, %105, %109 : vector<16x1xi1>, vector<16x1xf32>
    %111 = tpu.iota {dimensions = array<i32: 1>} : vector<16x128xi32>
    %c0_i32 = arith.constant 0 : i32
    %112 = vector.broadcast %c0_i32 : i32 to vector<16x128xi32>
    %113 = arith.cmpi eq, %111, %112 : vector<16x128xi32>
    %c1_i32 = arith.constant 1 : i32
    %114 = vector.broadcast %c1_i32 : i32 to vector<16x128xi32>
    %115 = arith.cmpi eq, %111, %114 : vector<16x128xi32>
    %cst_59 = arith.constant 0.000000e+00 : f32
    %116 = vector.shape_cast %96 : vector<16x1xf32> to vector<16x1xf32>
    %117 = vector.broadcast %116 : vector<16x1xf32> to vector<16x128xf32>
    %118 = vector.broadcast %cst_59 : f32 to vector<16x128xf32>
    %119 = arith.select %115, %117, %118 : vector<16x128xi1>, vector<16x128xf32>
    %120 = vector.shape_cast %110 : vector<16x1xf32> to vector<16x1xf32>
    %121 = vector.broadcast %120 : vector<16x1xf32> to vector<16x128xf32>
    %122 = arith.select %113, %121, %119 : vector<16x128xi1>, vector<16x128xf32>
    %c0_60 = arith.constant 0 : index
    %c0_61 = arith.constant 0 : index
    %123 = vector.load %arg12[%c0_60, %c0_61] : memref<16x128xf32, #tpu.memory_space<vmem>>, vector<16x128xf32>
    tpu.vector_store %arg12[%c0_60, %c0_61], %122 {strides = array<i32>} : memref<16x128xf32, #tpu.memory_space<vmem>>, vector<16x128xf32>,
    return
  }
  func.func @transform_0(%arg0: i32) -> (i32, i32) {
    %c0_i32 = arith.constant 0 : i32
    %c0_i32_0 = arith.constant 0 : i32
    %c0_i32_1 = arith.constant 0 : i32
    return %c0_i32, %c0_i32_0 : i32, i32
  }
  func.func @transform_1(%arg0: i32) -> (i32, i32) {
    %c0_i32 = arith.constant 0 : i32
    %c0_i32_0 = arith.constant 0 : i32
    %c0_i32_1 = arith.constant 0 : i32
    return %c0_i32, %c0_i32_0 : i32, i32
  }
  func.func @transform_2(%arg0: i32) -> (i32, i32) {
    %c0_i32 = arith.constant 0 : i32
    %c0_i32_0 = arith.constant 0 : i32
    %c0_i32_1 = arith.constant 0 : i32
    return %c0_i32, %c0_i32_0 : i32, i32
  }
  func.func @transform_3(%arg0: i32) -> (i32, i32) {
    %c0_i32 = arith.constant 0 : i32
    %c0_i32_0 = arith.constant 0 : i32
    %c0_i32_1 = arith.constant 0 : i32
    return %c0_i32, %c0_i32_0 : i32, i32
  }
  func.func @transform_4(%arg0: i32) -> (i32, i32) {
    %c0_i32 = arith.constant 0 : i32
    %c0_i32_0 = arith.constant 0 : i32
    %c0_i32_1 = arith.constant 0 : i32
    return %c0_i32, %c0_i32_0 : i32, i32
  }
  func.func @transform_5(%arg0: i32) -> (i32, i32) {
    %c0_i32 = arith.constant 0 : i32
    %c0_i32_0 = arith.constant 0 : i32
    %c0_i32_1 = arith.constant 0 : i32
    return %c0_i32, %c0_i32_0 : i32, i32
  }
  func.func @transform_6(%arg0: i32) -> (i32, i32) {
    %c0_i32 = arith.constant 0 : i32
    %c0_i32_0 = arith.constant 0 : i32
    %c0_i32_1 = arith.constant 0 : i32
    return %c0_i32, %c0_i32_0 : i32, i32
  }
  func.func @transform_7(%arg0: i32) -> (i32, i32) {
    %c0_i32 = arith.constant 0 : i32
    %c0_i32_0 = arith.constant 0 : i32
    %c0_i32_1 = arith.constant 0 : i32
    return %c0_i32, %c0_i32_0 : i32, i32
  }
  func.func @transform_8(%arg0: i32) -> (i32, i32) {
    %c0_i32 = arith.constant 0 : i32
    %c0_i32_0 = arith.constant 0 : i32
    %c0_i32_1 = arith.constant 0 : i32
    return %c0_i32, %c0_i32_0 : i32, i32
  }
  func.func @transform_9(%arg0: i32) -> (i32, i32) {
    %c0_i32 = arith.constant 0 : i32
    %c0_i32_0 = arith.constant 0 : i32
    %c0_i32_1 = arith.constant 0 : i32
    return %c0_i32, %c0_i32_0 : i32, i32
  }
  func.func @transform_10(%arg0: i32) -> (i32, i32) {
    %c0_i32 = arith.constant 0 : i32
    %c0_i32_0 = arith.constant 0 : i32
    %c0_i32_1 = arith.constant 0 : i32
    return %c0_i32, %c0_i32_0 : i32, i32
  }
  func.func @transform_11(%arg0: i32) -> (i32, i32) {
    %c0_i32 = arith.constant 0 : i32
    %c0_i32_0 = arith.constant 0 : i32
    %c0_i32_1 = arith.constant 0 : i32
    return %c0_i32, %c0_i32_0 : i32, i32
  }
}

</mosaic_0001>

<llo_original>
// kernel: tpu_custom_call.1
$region0: #{tpu_custom_call.1}
  #allocation0 [shape = 'u32[]', space=smem, size = 0x4, offset = 0x4, fixed_abs, tag = 'smem constant byte address 0x4 - core index']
  #allocation1 [shape = 'u32[144,128]{1,0:T(1,128)}', space=vmem, size = 0x12000, scoped, tag = 'internal scratch']
  #allocation2 [shape = 'f32[1,1]{1,0:T(1,128)S(1)}', space=vmem, size = 0x200, scoped, tag = 'scoped memory for tpu_custom_call.1']
  %s0 = inlined_call_operand.hbm [shape: bf16[16,128], index: 0, kind: input, shape index: {}]
  %s1 = inlined_call_operand.hbm [shape: bf16[16,128], index: 1, kind: input, shape index: {}]
  %s2 = inlined_call_operand.hbm [shape: bf16[128,128], index: 2, kind: input, shape index: {}]
  %s3 = inlined_call_operand.vmem [shape: f32[1,128], index: 3, kind: input, shape index: {}]
  %s4 = inlined_call_operand.hbm [shape: bf16[128,128], index: 4, kind: input, shape index: {}]
  %s5 = inlined_call_operand.vmem [shape: f32[1,128], index: 5, kind: input, shape index: {}]
  %s6 = inlined_call_operand.hbm [shape: bf16[128,128], index: 6, kind: input, shape index: {}]
  %s7 = inlined_call_operand.vmem [shape: f32[1,128], index: 7, kind: input, shape index: {}]
  %s8 = inlined_call_operand.vmem [shape: f32[1,128], index: 8, kind: input, shape index: {}]
  %s9 = inlined_call_operand.<no memory space> [shape: f32[1,1], index: 9, kind: input, shape index: {}]
  %s10 = inlined_call_operand.hbm [shape: f32[16,128], index: 10, kind: output, shape index: {0}]
  %s11 = inlined_call_operand.hbm [shape: f32[16,128], index: 11, kind: output, shape index: {1}]
  %12 = xla_tuple %s10, %s11
  %s13 = sld [smem:[#allocation0]]
  $region78: #{tpu_custom_call.1} parent=0
    _
  %s15 = ssub.s32 1, %s13
  %s16 = scalar_select 0, %s15, %s13
  %v17 = vstv %s9
  %18 = vst [vmem:[#allocation2] sm:$0x1] %v17
  $region1: #{tpu_custom_call.1} parent=0
    #allocation3 [shape = 'u8[4096]{0}', space=vmem, size = 0x1000, scoped, tag = 'input window, operand 0, single buffered']
    #allocation4 [shape = 's32[1]{0}', space=sflag, size = 0x4, scoped, tag = 'scoped memory for tpu_custom_call.1']
    #allocation5 [shape = 's32[1]{0}', space=sflag, size = 0x4, scoped, tag = 'scoped memory for tpu_custom_call.1']
    #allocation6 [shape = 'u8[4096]{0}', space=vmem, size = 0x1000, scoped, tag = 'input window, operand 1, single buffered']
    #allocation7 [shape = 's32[1]{0}', space=sflag, size = 0x4, scoped, tag = 'scoped memory for tpu_custom_call.1']
    #allocation8 [shape = 'u8[32768]{0}', space=vmem, size = 0x8000, scoped, tag = 'input window, operand 2, single buffered']
    #allocation9 [shape = 'u8[32768]{0}', space=vmem, size = 0x8000, scoped, tag = 'input window, operand 4, single buffered']
    #allocation10 [shape = 's32[1]{0}', space=sflag, size = 0x4, scoped, tag = 'scoped memory for tpu_custom_call.1']
    #allocation11 [shape = 'u8[32768]{0}', space=vmem, size = 0x8000, scoped, tag = 'input window, operand 6, single buffered']
    #allocation12 [shape = 'u8[8192]{0}', space=vmem, size = 0x2000, scoped, tag = 'output window, operand 0, single buffered']
    #allocation13 [shape = 'u8[8192]{0}', space=vmem, size = 0x2000, scoped, tag = 'output window, operand 1, single buffered']
    #allocation14 [shape = 's32[1]{0}', space=sflag, size = 0x4, scoped, tag = 'scoped memory for tpu_custom_call.1']
    %19 = vsyncpa [#allocation4], 0
    %20 = vsyncpa [#allocation7], 0
    %21 = vsyncpa [#allocation10], 0
    %22 = vsyncpa [#allocation5], 0
    %23 = vsyncpa [#allocation14], 0
    // Predicated region
    $region2: #{tpu_custom_call.1} parent=1 // pred_check
      _
    $region3: #{tpu_custom_call.1} parent=1 // pred_check_branch
      %25 = sbr.rel (0) target = $region5
    $region4: #{tpu_custom_call.1} parent=1 // pred_region
      %s27 = ssub.s32 128, 128
      %28 = vsyncadd [#allocation4], %s27
      %s29 = sshll.u32 [#allocation3], 4
      %s30 = int_to_ptr.vmem [resolvable:$true] %s29
      %35 = dma.hbm_to_vmem [thread:$0]  %s0, 128, %s30, [#allocation4], 64, 64, 4
    $region5: #{tpu_custom_call.1} parent=1 // pred_fallthru
      _
    // Predicated region
    $region6: #{tpu_custom_call.1} parent=1 // pred_check
      _
    $region7: #{tpu_custom_call.1} parent=1 // pred_check_branch
      %37 = sbr.rel (0) target = $region9
    $region8: #{tpu_custom_call.1} parent=1 // pred_region
      %s39 = ssub.s32 128, 128
      %40 = vsyncadd [#allocation7], %s39
      %s41 = sshll.u32 [#allocation6], 4
      %s42 = int_to_ptr.vmem [resolvable:$true] %s41
      %47 = dma.hbm_to_vmem [thread:$0]  %s1, 128, %s42, [#allocation7], 64, 64, 4
    $region9: #{tpu_custom_call.1} parent=1 // pred_fallthru
      _
    // Predicated region
    $region10: #{tpu_custom_call.1} parent=1 // pred_check
      _
    $region11: #{tpu_custom_call.1} parent=1 // pred_check_branch
      %49 = sbr.rel (0) target = $region13
    $region12: #{tpu_custom_call.1} parent=1 // pred_region
      %s51 = ssub.s32 1024, 1024
      %52 = vsyncadd [#allocation7], %s51
      %s53 = sshll.u32 [#allocation8], 4
      %s54 = int_to_ptr.vmem [resolvable:$true] %s53
      %59 = dma.hbm_to_vmem [thread:$0]  %s2, 1024, %s54, [#allocation7], 64, 64, 4
    $region13: #{tpu_custom_call.1} parent=1 // pred_fallthru
      _
    // Predicated region
    $region14: #{tpu_custom_call.1} parent=1 // pred_check
      _
    $region15: #{tpu_custom_call.1} parent=1 // pred_check_branch
      %61 = sbr.rel (0) target = $region17
    $region16: #{tpu_custom_call.1} parent=1 // pred_region
      _
    $region17: #{tpu_custom_call.1} parent=1 // pred_fallthru
      _
    // Predicated region
    $region18: #{tpu_custom_call.1} parent=1 // pred_check
      _
    $region19: #{tpu_custom_call.1} parent=1 // pred_check_branch
      %63 = sbr.rel (0) target = $region21
    $region20: #{tpu_custom_call.1} parent=1 // pred_region
      %s65 = ssub.s32 1024, 1024
      %66 = vsyncadd [#allocation10], %s65
      %s67 = sshll.u32 [#allocation9], 4
      %s68 = int_to_ptr.vmem [resolvable:$true] %s67
      %73 = dma.hbm_to_vmem [thread:$0]  %s4, 1024, %s68, [#allocation10], 64, 64, 4
    $region21: #{tpu_custom_call.1} parent=1 // pred_fallthru
      _
    // Predicated region
    $region22: #{tpu_custom_call.1} parent=1 // pred_check
      _
    $region23: #{tpu_custom_call.1} parent=1 // pred_check_branch
      %75 = sbr.rel (0) target = $region25
    $region24: #{tpu_custom_call.1} parent=1 // pred_region
      _
    $region25: #{tpu_custom_call.1} parent=1 // pred_fallthru
      _
    // Predicated region
    $region26: #{tpu_custom_call.1} parent=1 // pred_check
      _
    $region27: #{tpu_custom_call.1} parent=1 // pred_check_branch
      %77 = sbr.rel (0) target = $region29
    $region28: #{tpu_custom_call.1} parent=1 // pred_region
      %s79 = ssub.s32 1024, 1024
      %80 = vsyncadd [#allocation10], %s79
      %s81 = sshll.u32 [#allocation11], 4
      %s82 = int_to_ptr.vmem [resolvable:$true] %s81
      %87 = dma.hbm_to_vmem [thread:$0]  %s6, 1024, %s82, [#allocation10], 64, 64, 4
    $region29: #{tpu_custom_call.1} parent=1 // pred_fallthru
      _
    // Predicated region
    $region30: #{tpu_custom_call.1} parent=1 // pred_check
      _
    $region31: #{tpu_custom_call.1} parent=1 // pred_check_branch
      %89 = sbr.rel (0) target = $region33
    $region32: #{tpu_custom_call.1} parent=1 // pred_region
      _
    $region33: #{tpu_custom_call.1} parent=1 // pred_fallthru
      _
    // Predicated region
    $region34: #{tpu_custom_call.1} parent=1 // pred_check
      _
    $region35: #{tpu_custom_call.1} parent=1 // pred_check_branch
      %91 = sbr.rel (0) target = $region37
    $region36: #{tpu_custom_call.1} parent=1 // pred_region
      _
    $region37: #{tpu_custom_call.1} parent=1 // pred_fallthru
      _
    // Predicated region
    $region38: #{tpu_custom_call.1} parent=1 // pred_check
      _
    $region39: #{tpu_custom_call.1} parent=1 // pred_check_branch
      %93 = sbr.rel (0) target = $region41
    $region40: #{tpu_custom_call.1} parent=1 // pred_region
      _
    $region41: #{tpu_custom_call.1} parent=1 // pred_fallthru
      _
    // Predicated region
    $region42: #{tpu_custom_call.1} parent=1 // pred_check
      _
    $region43: #{tpu_custom_call.1} parent=1 // pred_check_branch
      %95 = sbr.rel (0) target = $region45
    $region44: #{tpu_custom_call.1} parent=1 // pred_region
      %96 = dma.done [#allocation4], 128
    $region45: #{tpu_custom_call.1} parent=1 // pred_fallthru
      _
    // Predicated region
    $region46: #{tpu_custom_call.1} parent=1 // pred_check
      _
    $region47: #{tpu_custom_call.1} parent=1 // pred_check_branch
      %98 = sbr.rel (0) target = $region49
    $region48: #{tpu_custom_call.1} parent=1 // pred_region
      %99 = dma.done [#allocation7], 128
    $region49: #{tpu_custom_call.1} parent=1 // pred_fallthru
      _
    // Predicated region
    $region50: #{tpu_custom_call.1} parent=1 // pred_check
      _
    $region51: #{tpu_custom_call.1} parent=1 // pred_check_branch
      %101 = sbr.rel (0) target = $region53
    $region52: #{tpu_custom_call.1} parent=1 // pred_region
      %102 = dma.done [#allocation7], 1024
    $region53: #{tpu_custom_call.1} parent=1 // pred_fallthru
      _
    // Predicated region
    $region54: #{tpu_custom_call.1} parent=1 // pred_check
      _
    $region55: #{tpu_custom_call.1} parent=1 // pred_check_branch
      %104 = sbr.rel (0) target = $region57
    $region56: #{tpu_custom_call.1} parent=1 // pred_region
      %105 = dma.done [#allocation10], 1024
    $region57: #{tpu_custom_call.1} parent=1 // pred_fallthru
      _
    // Predicated region
    $region58: #{tpu_custom_call.1} parent=1 // pred_check
      _
    $region59: #{tpu_custom_call.1} parent=1 // pred_check_branch
      %107 = sbr.rel (0) target = $region61
    $region60: #{tpu_custom_call.1} parent=1 // pred_region
      %108 = dma.done [#allocation10], 1024
    $region61: #{tpu_custom_call.1} parent=1 // pred_fallthru
      _
    %v110 = vld [vmem:[#allocation3] sm:$0xf]
    %v111 = vld [vmem:[#allocation3 + $0x4] sm:$0xf]
    %v112 = vld [vmem:[#allocation8] sm:$0xf]
    %v113 = vld [vmem:[#allocation8 + $0x4] sm:$0xf]
    %v114 = vld [vmem:[#allocation8 + $0x8] sm:$0xf]
    %v115 = vld [vmem:[#allocation8 + $0xc] sm:$0xf]
    %v116 = vld [vmem:[#allocation8 + $0x10] sm:$0xf]
    %v117 = vld [vmem:[#allocation8 + $0x14] sm:$0xf]
    %v118 = vld [vmem:[#allocation8 + $0x18] sm:$0xf]
    %v119 = vld [vmem:[#allocation8 + $0x1c] sm:$0xf]
    %v120 = vld [vmem:[#allocation8 + $0x20] sm:$0xf]
    %v121 = vld [vmem:[#allocation8 + $0x24] sm:$0xf]
    %v122 = vld [vmem:[#allocation8 + $0x28] sm:$0xf]
    %v123 = vld [vmem:[#allocation8 + $0x2c] sm:$0xf]
    %v124 = vld [vmem:[#allocation8 + $0x30] sm:$0xf]
    %v125 = vld [vmem:[#allocation8 + $0x34] sm:$0xf]
    %v126 = vld [vmem:[#allocation8 + $0x38] sm:$0xf]
    %v127 = vld [vmem:[#allocation8 + $0x3c] sm:$0xf]
    %v128 = vld [vmem:[%s3] sm:$0x1]
    %v130 = vlaneseq
    %v131 = vshrl.u32 %v130, 7
    %v132 = vsub.s32 0, %v131
    %v133 = vrot.slane %v128, %v132
    %v137 = vunpack.c.l.b16 %v110
    %v138 = vunpack.c.l.b16 %v111
    %v139 = vpack.c.b16 %v138, %v137
    %v157 = vunpack.c.l.b16 %v112
    %v158 = vunpack.c.l.b16 %v113
    %v159 = vunpack.c.l.b16 %v114
    %v160 = vunpack.c.l.b16 %v115
    %v161 = vunpack.c.l.b16 %v116
    %v162 = vunpack.c.l.b16 %v117
    %v163 = vunpack.c.l.b16 %v118
    %v164 = vunpack.c.l.b16 %v119
    %v165 = vunpack.c.l.b16 %v120
    %v166 = vunpack.c.l.b16 %v121
    %v167 = vunpack.c.l.b16 %v122
    %v168 = vunpack.c.l.b16 %v123
    %v169 = vunpack.c.l.b16 %v124
    %v170 = vunpack.c.l.b16 %v125
    %v171 = vunpack.c.l.b16 %v126
    %v172 = vunpack.c.l.b16 %v127
    %v173 = vpack.c.b16 %v158, %v157
    %v174 = vpack.c.b16 %v160, %v159
    %v175 = vpack.c.b16 %v162, %v161
    %v176 = vpack.c.b16 %v164, %v163
    %v177 = vpack.c.b16 %v166, %v165
    %v178 = vpack.c.b16 %v168, %v167
    %v179 = vpack.c.b16 %v170, %v169
    %v180 = vpack.c.b16 %v172, %v171
    %189 = vmatprep.subr.bf16.mxu0 0
    %190 = vmatpush1.bf16.msra.mxu0 %v173
    %191 = vmatprep.subr.bf16.mxu0 0
    %192 = vmatpush1.bf16.msra.mxu0 %v174
    %193 = vmatprep.subr.bf16.mxu0 0
    %194 = vmatpush1.bf16.msra.mxu0 %v175
    %195 = vmatprep.subr.bf16.mxu0 0
    %196 = vmatpush1.bf16.msra.mxu0 %v176
    %197 = vmatprep.subr.bf16.mxu0 0
    %198 = vmatpush1.bf16.msra.mxu0 %v177
    %199 = vmatprep.subr.bf16.mxu0 0
    %200 = vmatpush1.bf16.msra.mxu0 %v178
    %201 = vmatprep.subr.bf16.mxu0 0
    %202 = vmatpush1.bf16.msra.mxu0 %v179
    %203 = vmatprep.subr.bf16.mxu0 0
    %204 = vmatpush1.bf16.msra.mxu0 %v180
    %205 = vmatprep.subr.bf16.mxu0 0
    %206 = vmatpush1.bf16.msra.mxu0 0
    %207 = vmatprep.subr.bf16.mxu0 0
    %208 = vmatpush1.bf16.msra.mxu0 0
    %209 = vmatprep.subr.bf16.mxu0 0
    %210 = vmatpush1.bf16.msra.mxu0 0
    %211 = vmatprep.subr.bf16.mxu0 0
    %212 = vmatpush1.bf16.msra.mxu0 0
    %213 = vmatprep.subr.bf16.mxu0 0
    %214 = vmatpush1.bf16.msra.mxu0 0
    %215 = vmatprep.subr.bf16.mxu0 0
    %216 = vmatpush1.bf16.msra.mxu0 0
    %217 = vmatprep.subr.bf16.mxu0 0
    %218 = vmatpush1.bf16.msra.mxu0 0
    %219 = vmatprep.subr.bf16.mxu0 0
    %220 = vmatpush1.bf16.msra.mxu0 0
    %221 = vmatprep.mubr.bf16.mxu0 0
    %222 = vmatmul.mubr.bf16.gmra.mrb[0].mxu0 %v139
    %v223 = vpop.f32.mrb[0].mxu0
    %v224 = vadd.f32 %v133, %v223
    %v225 = vpop.f32.mrb[0].mxu0
    %v226 = vpop.f32.mrb[0].mxu0
    %v227 = vadd.f32 %v133, %v226
    %v228 = vpop.f32.mrb[0].mxu0
    %229 = vdwg.mxu0
    %vm230 = vcmp.gt.f32.partialorder %v224, 0.0
    %vm231 = vcmp.gt.f32.partialorder %v227, 0.0
    %v232 = vmul.f32 %v224, 0.01
    %v233 = vmul.f32 %v227, 0.01
    %v234 = vsel %vm230, %v224, %v232
    %v235 = vsel %vm231, %v227, %v233
    %v236 = vpack.c.bf16 %v235, %v234
    %v237 = vld [vmem:[#allocation9] sm:$0xf]
    %v238 = vld [vmem:[#allocation9 + $0x4] sm:$0xf]
    %v239 = vld [vmem:[#allocation9 + $0x8] sm:$0xf]
    %v240 = vld [vmem:[#allocation9 + $0xc] sm:$0xf]
    %v241 = vld [vmem:[#allocation9 + $0x10] sm:$0xf]
    %v242 = vld [vmem:[#allocation9 + $0x14] sm:$0xf]
    %v243 = vld [vmem:[#allocation9 + $0x18] sm:$0xf]
    %v244 = vld [vmem:[#allocation9 + $0x1c] sm:$0xf]
    %v245 = vld [vmem:[#allocation9 + $0x20] sm:$0xf]
    %v246 = vld [vmem:[#allocation9 + $0x24] sm:$0xf]
    %v247 = vld [vmem:[#allocation9 + $0x28] sm:$0xf]
    %v248 = vld [vmem:[#allocation9 + $0x2c] sm:$0xf]
    %v249 = vld [vmem:[#allocation9 + $0x30] sm:$0xf]
    %v250 = vld [vmem:[#allocation9 + $0x34] sm:$0xf]
    %v251 = vld [vmem:[#allocation9 + $0x38] sm:$0xf]
    %v252 = vld [vmem:[#allocation9 + $0x3c] sm:$0xf]
    %v253 = vld [vmem:[%s5] sm:$0x1]
    %v255 = vlaneseq
    %v256 = vshrl.u32 %v255, 7
    %v257 = vsub.s32 0, %v256
    %v258 = vrot.slane %v253, %v257
    %v276 = vunpack.c.l.b16 %v237
    %v277 = vunpack.c.l.b16 %v238
    %v278 = vunpack.c.l.b16 %v239
    %v279 = vunpack.c.l.b16 %v240
    %v280 = vunpack.c.l.b16 %v241
    %v281 = vunpack.c.l.b16 %v242
    %v282 = vunpack.c.l.b16 %v243
    %v283 = vunpack.c.l.b16 %v244
    %v284 = vunpack.c.l.b16 %v245
    %v285 = vunpack.c.l.b16 %v246
    %v286 = vunpack.c.l.b16 %v247
    %v287 = vunpack.c.l.b16 %v248
    %v288 = vunpack.c.l.b16 %v249
    %v289 = vunpack.c.l.b16 %v250
    %v290 = vunpack.c.l.b16 %v251
    %v291 = vunpack.c.l.b16 %v252
    %v292 = vpack.c.b16 %v277, %v276
    %v293 = vpack.c.b16 %v279, %v278
    %v294 = vpack.c.b16 %v281, %v280
    %v295 = vpack.c.b16 %v283, %v282
    %v296 = vpack.c.b16 %v285, %v284
    %v297 = vpack.c.b16 %v287, %v286
    %v298 = vpack.c.b16 %v289, %v288
    %v299 = vpack.c.b16 %v291, %v290
    %308 = vmatprep.subr.bf16.mxu0 0
    %309 = vmatpush1.bf16.msra.mxu0 %v292
    %310 = vmatprep.subr.bf16.mxu0 0
    %311 = vmatpush1.bf16.msra.mxu0 %v293
    %312 = vmatprep.subr.bf16.mxu0 0
    %313 = vmatpush1.bf16.msra.mxu0 %v294
    %314 = vmatprep.subr.bf16.mxu0 0
    %315 = vmatpush1.bf16.msra.mxu0 %v295
    %316 = vmatprep.subr.bf16.mxu0 0
    %317 = vmatpush1.bf16.msra.mxu0 %v296
    %318 = vmatprep.subr.bf16.mxu0 0
    %319 = vmatpush1.bf16.msra.mxu0 %v297
    %320 = vmatprep.subr.bf16.mxu0 0
    %321 = vmatpush1.bf16.msra.mxu0 %v298
    %322 = vmatprep.subr.bf16.mxu0 0
    %323 = vmatpush1.bf16.msra.mxu0 %v299
    %324 = vmatprep.subr.bf16.mxu0 0
    %325 = vmatpush1.bf16.msra.mxu0 0
    %326 = vmatprep.subr.bf16.mxu0 0
    %327 = vmatpush1.bf16.msra.mxu0 0
    %328 = vmatprep.subr.bf16.mxu0 0
    %329 = vmatpush1.bf16.msra.mxu0 0
    %330 = vmatprep.subr.bf16.mxu0 0
    %331 = vmatpush1.bf16.msra.mxu0 0
    %332 = vmatprep.subr.bf16.mxu0 0
    %333 = vmatpush1.bf16.msra.mxu0 0
    %334 = vmatprep.subr.bf16.mxu0 0
    %335 = vmatpush1.bf16.msra.mxu0 0
    %336 = vmatprep.subr.bf16.mxu0 0
    %337 = vmatpush1.bf16.msra.mxu0 0
    %338 = vmatprep.subr.bf16.mxu0 0
    %339 = vmatpush1.bf16.msra.mxu0 0
    %340 = vmatprep.mubr.bf16.mxu0 0
    %341 = vmatmul.mubr.bf16.gmra.mrb[0].mxu0 %v236
    %v342 = vpop.f32.mrb[0].mxu0
    %v343 = vadd.f32 %v258, %v342
    %v344 = vpop.f32.mrb[0].mxu0
    %v345 = vpop.f32.mrb[0].mxu0
    %v346 = vadd.f32 %v258, %v345
    %v347 = vpop.f32.mrb[0].mxu0
    %348 = vdwg.mxu0
    %vm349 = vcmp.gt.f32.partialorder %v343, 0.0
    %vm350 = vcmp.gt.f32.partialorder %v346, 0.0
    %v351 = vmul.f32 %v343, 1.442695
    %v352 = vpow.pop %v351
    %v353 = vmul.f32 %v346, 1.442695
    %v354 = vpow.pop %v353
    %v355 = vsub.f32 %v352, 1.0
    %v356 = vsub.f32 %v354, 1.0
    %v357 = vsel %vm349, %v343, %v355
    %v358 = vsel %vm350, %v346, %v356
    %v359 = vpack.c.bf16 %v358, %v357
    %v360 = vld [vmem:[#allocation11] sm:$0xf]
    %v361 = vld [vmem:[#allocation11 + $0x4] sm:$0xf]
    %v362 = vld [vmem:[#allocation11 + $0x8] sm:$0xf]
    %v363 = vld [vmem:[#allocation11 + $0xc] sm:$0xf]
    %v364 = vld [vmem:[#allocation11 + $0x10] sm:$0xf]
    %v365 = vld [vmem:[#allocation11 + $0x14] sm:$0xf]
    %v366 = vld [vmem:[#allocation11 + $0x18] sm:$0xf]
    %v367 = vld [vmem:[#allocation11 + $0x1c] sm:$0xf]
    %v368 = vld [vmem:[#allocation11 + $0x20] sm:$0xf]
    %v369 = vld [vmem:[#allocation11 + $0x24] sm:$0xf]
    %v370 = vld [vmem:[#allocation11 + $0x28] sm:$0xf]
    %v371 = vld [vmem:[#allocation11 + $0x2c] sm:$0xf]
    %v372 = vld [vmem:[#allocation11 + $0x30] sm:$0xf]
    %v373 = vld [vmem:[#allocation11 + $0x34] sm:$0xf]
    %v374 = vld [vmem:[#allocation11 + $0x38] sm:$0xf]
    %v375 = vld [vmem:[#allocation11 + $0x3c] sm:$0xf]
    %v376 = vld [vmem:[%s7] sm:$0x1]
    %v378 = vlaneseq
    %v379 = vshrl.u32 %v378, 7
    %v380 = vsub.s32 0, %v379
    %v381 = vrot.slane %v376, %v380
    %v399 = vunpack.c.l.b16 %v360
    %v400 = vunpack.c.l.b16 %v361
    %v401 = vunpack.c.l.b16 %v362
    %v402 = vunpack.c.l.b16 %v363
    %v403 = vunpack.c.l.b16 %v364
    %v404 = vunpack.c.l.b16 %v365
    %v405 = vunpack.c.l.b16 %v366
    %v406 = vunpack.c.l.b16 %v367
    %v407 = vunpack.c.l.b16 %v368
    %v408 = vunpack.c.l.b16 %v369
    %v409 = vunpack.c.l.b16 %v370
    %v410 = vunpack.c.l.b16 %v371
    %v411 = vunpack.c.l.b16 %v372
    %v412 = vunpack.c.l.b16 %v373
    %v413 = vunpack.c.l.b16 %v374
    %v414 = vunpack.c.l.b16 %v375
    %v415 = vpack.c.b16 %v400, %v399
    %v416 = vpack.c.b16 %v402, %v401
    %v417 = vpack.c.b16 %v404, %v403
    %v418 = vpack.c.b16 %v406, %v405
    %v419 = vpack.c.b16 %v408, %v407
    %v420 = vpack.c.b16 %v410, %v409
    %v421 = vpack.c.b16 %v412, %v411
    %v422 = vpack.c.b16 %v414, %v413
    %431 = vmatprep.subr.bf16.mxu0 0
    %432 = vmatpush1.bf16.msra.mxu0 %v415
    %433 = vmatprep.subr.bf16.mxu0 0
    %434 = vmatpush1.bf16.msra.mxu0 %v416
    %435 = vmatprep.subr.bf16.mxu0 0
    %436 = vmatpush1.bf16.msra.mxu0 %v417
    %437 = vmatprep.subr.bf16.mxu0 0
    %438 = vmatpush1.bf16.msra.mxu0 %v418
    %439 = vmatprep.subr.bf16.mxu0 0
    %440 = vmatpush1.bf16.msra.mxu0 %v419
    %441 = vmatprep.subr.bf16.mxu0 0
    %442 = vmatpush1.bf16.msra.mxu0 %v420
    %443 = vmatprep.subr.bf16.mxu0 0
    %444 = vmatpush1.bf16.msra.mxu0 %v421
    %445 = vmatprep.subr.bf16.mxu0 0
    %446 = vmatpush1.bf16.msra.mxu0 %v422
    %447 = vmatprep.subr.bf16.mxu0 0
    %448 = vmatpush1.bf16.msra.mxu0 0
    %449 = vmatprep.subr.bf16.mxu0 0
    %450 = vmatpush1.bf16.msra.mxu0 0
    %451 = vmatprep.subr.bf16.mxu0 0
    %452 = vmatpush1.bf16.msra.mxu0 0
    %453 = vmatprep.subr.bf16.mxu0 0
    %454 = vmatpush1.bf16.msra.mxu0 0
    %455 = vmatprep.subr.bf16.mxu0 0
    %456 = vmatpush1.bf16.msra.mxu0 0
    %457 = vmatprep.subr.bf16.mxu0 0
    %458 = vmatpush1.bf16.msra.mxu0 0
    %459 = vmatprep.subr.bf16.mxu0 0
    %460 = vmatpush1.bf16.msra.mxu0 0
    %461 = vmatprep.subr.bf16.mxu0 0
    %462 = vmatpush1.bf16.msra.mxu0 0
    %463 = vmatprep.mubr.bf16.mxu0 0
    %464 = vmatmul.mubr.bf16.gmra.mrb[0].mxu0 %v359
    %v465 = vpop.f32.mrb[0].mxu0
    %v466 = vadd.f32 %v381, %v465
    %v467 = vpop.f32.mrb[0].mxu0
    %v468 = vpop.f32.mrb[0].mxu0
    %v469 = vadd.f32 %v381, %v468
    %v470 = vpop.f32.mrb[0].mxu0
    %471 = vdwg.mxu0
    %v472 = vmul.f32 %v466, %v466
    %v473 = vmul.f32 %v469, %v469
    %474 = vadd.xlane.f32.xlu0 %v472
    %v475 = vpop.xlane.xlu0 %474
    %476 = vadd.xlane.f32.xlu0 %v473
    %v477 = vpop.xlane.xlu0 %476
    %v478 = vmax.f32 %v475, 1e-24
    %v479 = vmax.f32 %v477, 1e-24
    %v480 = vrsqrt.pop %v478
    %v481 = vrsqrt.pop %v479
    %v482 = vmul.f32 %v466, %v480
    %v483 = vmul.f32 %v469, %v481
    %v484 = vld [vmem:[#allocation6] sm:$0xf]
    %v485 = vld [vmem:[#allocation6 + $0x4] sm:$0xf]
    %v488 = vunpack.c.l.b16 %v484
    %v489 = vunpack.c.l.b16 %v485
    %v490 = vpack.c.b16 %v489, %v488
    %492 = vmatprep.subr.bf16.mxu0 0
    %493 = vmatpush1.bf16.msra.mxu0 %v173
    %494 = vmatprep.subr.bf16.mxu0 0
    %495 = vmatpush1.bf16.msra.mxu0 %v174
    %496 = vmatprep.subr.bf16.mxu0 0
    %497 = vmatpush1.bf16.msra.mxu0 %v175
    %498 = vmatprep.subr.bf16.mxu0 0
    %499 = vmatpush1.bf16.msra.mxu0 %v176
    %500 = vmatprep.subr.bf16.mxu0 0
    %501 = vmatpush1.bf16.msra.mxu0 %v177
    %502 = vmatprep.subr.bf16.mxu0 0
    %503 = vmatpush1.bf16.msra.mxu0 %v178
    %504 = vmatprep.subr.bf16.mxu0 0
    %505 = vmatpush1.bf16.msra.mxu0 %v179
    %506 = vmatprep.subr.bf16.mxu0 0
    %507 = vmatpush1.bf16.msra.mxu0 %v180
    %508 = vmatprep.subr.bf16.mxu0 0
    %509 = vmatpush1.bf16.msra.mxu0 0
    %510 = vmatprep.subr.bf16.mxu0 0
    %511 = vmatpush1.bf16.msra.mxu0 0
    %512 = vmatprep.subr.bf16.mxu0 0
    %513 = vmatpush1.bf16.msra.mxu0 0
    %514 = vmatprep.subr.bf16.mxu0 0
    %515 = vmatpush1.bf16.msra.mxu0 0
    %516 = vmatprep.subr.bf16.mxu0 0
    %517 = vmatpush1.bf16.msra.mxu0 0
    %518 = vmatprep.subr.bf16.mxu0 0
    %519 = vmatpush1.bf16.msra.mxu0 0
    %520 = vmatprep.subr.bf16.mxu0 0
    %521 = vmatpush1.bf16.msra.mxu0 0
    %522 = vmatprep.subr.bf16.mxu0 0
    %523 = vmatpush1.bf16.msra.mxu0 0
    %524 = vmatprep.mubr.bf16.mxu0 0
    %525 = vmatmul.mubr.bf16.gmra.mrb[0].mxu0 %v490
    %v526 = vpop.f32.mrb[0].mxu0
    %v527 = vadd.f32 %v133, %v526
    %v528 = vpop.f32.mrb[0].mxu0
    %v529 = vpop.f32.mrb[0].mxu0
    %v530 = vadd.f32 %v133, %v529
    %v531 = vpop.f32.mrb[0].mxu0
    %532 = vdwg.mxu0
    %vm533 = vcmp.gt.f32.partialorder %v527, 0.0
    %vm534 = vcmp.gt.f32.partialorder %v530, 0.0
    %v535 = vmul.f32 %v527, 0.01
    %v536 = vmul.f32 %v530, 0.01
    %v537 = vsel %vm533, %v527, %v535
    %v538 = vsel %vm534, %v530, %v536
    %v539 = vpack.c.bf16 %v538, %v537
    %540 = vmatprep.subr.bf16.mxu0 0
    %541 = vmatpush1.bf16.msra.mxu0 %v292
    %542 = vmatprep.subr.bf16.mxu0 0
    %543 = vmatpush1.bf16.msra.mxu0 %v293
    %544 = vmatprep.subr.bf16.mxu0 0
    %545 = vmatpush1.bf16.msra.mxu0 %v294
    %546 = vmatprep.subr.bf16.mxu0 0
    %547 = vmatpush1.bf16.msra.mxu0 %v295
    %548 = vmatprep.subr.bf16.mxu0 0
    %549 = vmatpush1.bf16.msra.mxu0 %v296
    %550 = vmatprep.subr.bf16.mxu0 0
    %551 = vmatpush1.bf16.msra.mxu0 %v297
    %552 = vmatprep.subr.bf16.mxu0 0
    %553 = vmatpush1.bf16.msra.mxu0 %v298
    %554 = vmatprep.subr.bf16.mxu0 0
    %555 = vmatpush1.bf16.msra.mxu0 %v299
    %556 = vmatprep.subr.bf16.mxu0 0
    %557 = vmatpush1.bf16.msra.mxu0 0
    %558 = vmatprep.subr.bf16.mxu0 0
    %559 = vmatpush1.bf16.msra.mxu0 0
    %560 = vmatprep.subr.bf16.mxu0 0
    %561 = vmatpush1.bf16.msra.mxu0 0
    %562 = vmatprep.subr.bf16.mxu0 0
    %563 = vmatpush1.bf16.msra.mxu0 0
    %564 = vmatprep.subr.bf16.mxu0 0
    %565 = vmatpush1.bf16.msra.mxu0 0
    %566 = vmatprep.subr.bf16.mxu0 0
    %567 = vmatpush1.bf16.msra.mxu0 0
    %568 = vmatprep.subr.bf16.mxu0 0
    %569 = vmatpush1.bf16.msra.mxu0 0
    %570 = vmatprep.subr.bf16.mxu0 0
    %571 = vmatpush1.bf16.msra.mxu0 0
    %572 = vmatprep.mubr.bf16.mxu0 0
    %573 = vmatmul.mubr.bf16.gmra.mrb[0].mxu0 %v539
    %v574 = vpop.f32.mrb[0].mxu0
    %v575 = vadd.f32 %v258, %v574
    %v576 = vpop.f32.mrb[0].mxu0
    %v577 = vpop.f32.mrb[0].mxu0
    %v578 = vadd.f32 %v258, %v577
    %v579 = vpop.f32.mrb[0].mxu0
    %580 = vdwg.mxu0
    %vm581 = vcmp.gt.f32.partialorder %v575, 0.0
    %vm582 = vcmp.gt.f32.partialorder %v578, 0.0
    %v583 = vmul.f32 %v575, 1.442695
    %v584 = vpow.pop %v583
    %v585 = vmul.f32 %v578, 1.442695
    %v586 = vpow.pop %v585
    %v587 = vsub.f32 %v584, 1.0
    %v588 = vsub.f32 %v586, 1.0
    %v589 = vsel %vm581, %v575, %v587
    %v590 = vsel %vm582, %v578, %v588
    %v591 = vpack.c.bf16 %v590, %v589
    %592 = vmatprep.subr.bf16.mxu0 0
    %593 = vmatpush1.bf16.msra.mxu0 %v415
    %594 = vmatprep.subr.bf16.mxu0 0
    %595 = vmatpush1.bf16.msra.mxu0 %v416
    %596 = vmatprep.subr.bf16.mxu0 0
    %597 = vmatpush1.bf16.msra.mxu0 %v417
    %598 = vmatprep.subr.bf16.mxu0 0
    %599 = vmatpush1.bf16.msra.mxu0 %v418
    %600 = vmatprep.subr.bf16.mxu0 0
    %601 = vmatpush1.bf16.msra.mxu0 %v419
    %602 = vmatprep.subr.bf16.mxu0 0
    %603 = vmatpush1.bf16.msra.mxu0 %v420
    %604 = vmatprep.subr.bf16.mxu0 0
    %605 = vmatpush1.bf16.msra.mxu0 %v421
    %606 = vmatprep.subr.bf16.mxu0 0
    %607 = vmatpush1.bf16.msra.mxu0 %v422
    %608 = vmatprep.subr.bf16.mxu0 0
    %609 = vmatpush1.bf16.msra.mxu0 0
    %610 = vmatprep.subr.bf16.mxu0 0
    %611 = vmatpush1.bf16.msra.mxu0 0
    %612 = vmatprep.subr.bf16.mxu0 0
    %613 = vmatpush1.bf16.msra.mxu0 0
    %614 = vmatprep.subr.bf16.mxu0 0
    %615 = vmatpush1.bf16.msra.mxu0 0
    %616 = vmatprep.subr.bf16.mxu0 0
    %617 = vmatpush1.bf16.msra.mxu0 0
    %618 = vmatprep.subr.bf16.mxu0 0
    %619 = vmatpush1.bf16.msra.mxu0 0
    %620 = vmatprep.subr.bf16.mxu0 0
    %621 = vmatpush1.bf16.msra.mxu0 0
    %622 = vmatprep.subr.bf16.mxu0 0
    %623 = vmatpush1.bf16.msra.mxu0 0
    %624 = vmatprep.mubr.bf16.mxu0 0
    %625 = vmatmul.mubr.bf16.gmra.mrb[0].mxu0 %v591
    %v626 = vpop.f32.mrb[0].mxu0
    %v627 = vadd.f32 %v381, %v626
    %v628 = vpop.f32.mrb[0].mxu0
    %v629 = vpop.f32.mrb[0].mxu0
    %v630 = vadd.f32 %v381, %v629
    %v631 = vpop.f32.mrb[0].mxu0
    %632 = vdwg.mxu0
    %v633 = vmul.f32 %v627, %v627
    %v634 = vmul.f32 %v630, %v630
    %635 = vadd.xlane.f32.xlu0 %v633
    %v636 = vpop.xlane.xlu0 %635
    %637 = vadd.xlane.f32.xlu0 %v634
    %v638 = vpop.xlane.xlu0 %637
    %v639 = vmax.f32 %v636, 1e-24
    %v640 = vmax.f32 %v638, 1e-24
    %v641 = vrsqrt.pop %v639
    %v642 = vrsqrt.pop %v640
    %v643 = vmul.f32 %v627, %v641
    %v644 = vmul.f32 %v630, %v642
    %645 = vxpose.xlu0.b32.start [1/16] %v643, 128
    %646 = vxpose.xlu0.b32.cont [2/16] %v644, 128
    %647 = vxpose.xlu0.b32.cont [3/16] 0.0, 128
    %648 = vxpose.xlu0.b32.cont [4/16] 0.0, 128
    %649 = vxpose.xlu0.b32.cont [5/16] 0.0, 128
    %650 = vxpose.xlu0.b32.cont [6/16] 0.0, 128
    %651 = vxpose.xlu0.b32.cont [7/16] 0.0, 128
    %652 = vxpose.xlu0.b32.cont [8/16] 0.0, 128
    %653 = vxpose.xlu0.b32.cont [9/16] 0.0, 128
    %654 = vxpose.xlu0.b32.cont [10/16] 0.0, 128
    %655 = vxpose.xlu0.b32.cont [11/16] 0.0, 128
    %656 = vxpose.xlu0.b32.cont [12/16] 0.0, 128
    %657 = vxpose.xlu0.b32.cont [13/16] 0.0, 128
    %658 = vxpose.xlu0.b32.cont [14/16] 0.0, 128
    %659 = vxpose.xlu0.b32.cont [15/16] 0.0, 128
    %660 = vxpose.xlu0.b32.end [16/16] 0.0, 128
    %v661 = vpop.trf.xlu0
    %v662 = vpop.trf.xlu0
    %v663 = vpop.trf.xlu0
    %v664 = vpop.trf.xlu0
    %v665 = vpop.trf.xlu0
    %v666 = vpop.trf.xlu0
    %v667 = vpop.trf.xlu0
    %v668 = vpop.trf.xlu0
    %v669 = vpop.trf.xlu0
    %v670 = vpop.trf.xlu0
    %v671 = vpop.trf.xlu0
    %v672 = vpop.trf.xlu0
    %v673 = vpop.trf.xlu0
    %v674 = vpop.trf.xlu0
    %v675 = vpop.trf.xlu0
    %v676 = vpop.trf.xlu0
    %v677 = vpack.c.bf16 %v662, %v661
    %v678 = vpack.c.bf16 %v664, %v663
    %v679 = vpack.c.bf16 %v666, %v665
    %v680 = vpack.c.bf16 %v668, %v667
    %v681 = vpack.c.bf16 %v670, %v669
    %v682 = vpack.c.bf16 %v672, %v671
    %v683 = vpack.c.bf16 %v674, %v673
    %v684 = vpack.c.bf16 %v676, %v675
    %v685 = vpack.c.bf16 %v483, %v482
    %686 = vmatprep.subr.bf16.mxu0 0
    %687 = vmatpush1.bf16.msra.mxu0 %v677
    %688 = vmatprep.subr.bf16.mxu0 0
    %689 = vmatpush1.bf16.msra.mxu0 %v678
    %690 = vmatprep.subr.bf16.mxu0 0
    %691 = vmatpush1.bf16.msra.mxu0 %v679
    %692 = vmatprep.subr.bf16.mxu0 0
    %693 = vmatpush1.bf16.msra.mxu0 %v680
    %694 = vmatprep.subr.bf16.mxu0 0
    %695 = vmatpush1.bf16.msra.mxu0 %v681
    %696 = vmatprep.subr.bf16.mxu0 0
    %697 = vmatpush1.bf16.msra.mxu0 %v682
    %698 = vmatprep.subr.bf16.mxu0 0
    %699 = vmatpush1.bf16.msra.mxu0 %v683
    %700 = vmatprep.subr.bf16.mxu0 0
    %701 = vmatpush1.bf16.msra.mxu0 %v684
    %702 = vmatprep.subr.bf16.mxu0 0
    %703 = vmatpush1.bf16.msra.mxu0 0
    %704 = vmatprep.subr.bf16.mxu0 0
    %705 = vmatpush1.bf16.msra.mxu0 0
    %706 = vmatprep.subr.bf16.mxu0 0
    %707 = vmatpush1.bf16.msra.mxu0 0
    %708 = vmatprep.subr.bf16.mxu0 0
    %709 = vmatpush1.bf16.msra.mxu0 0
    %710 = vmatprep.subr.bf16.mxu0 0
    %711 = vmatpush1.bf16.msra.mxu0 0
    %712 = vmatprep.subr.bf16.mxu0 0
    %713 = vmatpush1.bf16.msra.mxu0 0
    %714 = vmatprep.subr.bf16.mxu0 0
    %715 = vmatpush1.bf16.msra.mxu0 0
    %716 = vmatprep.subr.bf16.mxu0 0
    %717 = vmatpush1.bf16.msra.mxu0 0
    %718 = vmatprep.mubr.bf16.mxu0 0
    %719 = vmatmul.mubr.bf16.gmra.mrb[0].mxu0 %v685
    %v720 = vpop.f32.mrb[0].mxu0
    %v721 = vadd.f32 0.0, %v720
    %v722 = vpop.f32.mrb[0].mxu0
    %v723 = vpop.f32.mrb[0].mxu0
    %v724 = vadd.f32 0.0, %v723
    %v725 = vpop.f32.mrb[0].mxu0
    %726 = vdwg.mxu0
    %v727 = vmul.f32 %v721, 5.0
    %v728 = vmul.f32 %v724, 5.0
    %v729 = vlaneseq
    %v730 = vand.u32 %v729, 127
    %vm731 = vcmp.lt.s32.totalorder %v730, 8
    %v732 = vsel %vm731, %v727, -1e+30
    %v733 = vsel %vm731, %v728, -1e+30
    %v734 = vlaneseq
    %v735 = vshrl.u32 %v734, 7
    %v736 = vadd.s32 %v735, 8
    %vm737 = vcmp.eq.s32.totalorder %v735, %v730
    %vm738 = vcmp.eq.s32.totalorder %v736, %v730
    %v739 = vsel %vm737, %v732, 0.0
    %v740 = vsel %vm738, %v733, 0.0
    %vm741 = vcmask 130048
    %v742 = vsel %vm741, %v739, 0.0
    %743 = vadd.xlane.f32.xlu0 %v742
    %v744 = vpop.xlane.xlu0 %743
    %v745 = vsel %vm741, %v740, 0.0
    %746 = vadd.xlane.f32.xlu0 %v745
    %v747 = vpop.xlane.xlu0 %746
    %v748 = vmul.f32 %v732, 1.442695
    %v749 = vpow.pop %v748
    %v750 = vmul.f32 %v733, 1.442695
    %v751 = vpow.pop %v750
    %v752 = vsel %vm741, %v749, 0.0
    %753 = vadd.xlane.f32.xlu0 %v752
    %v754 = vpop.xlane.xlu0 %753
    %v755 = vsel %vm741, %v751, 0.0
    %756 = vadd.xlane.f32.xlu0 %v755
    %v757 = vpop.xlane.xlu0 %756
    %v758 = vlog2.pop %v754
    %v759 = vmul.f32 %v758, 0.6931472
    %v760 = vlog2.pop %v757
    %v761 = vmul.f32 %v760, 0.6931472
    %v762 = vsub.f32 %v759, %v744
    %v763 = vsub.f32 %v761, %v747
    %764 = vst [vmem:[#allocation12] sm:$0xff] %v234
    %765 = vst [vmem:[#allocation12 + $0x8] sm:$0xff] %v235
    %v766 = vld [vmem:[%s8] sm:$0x1]
    %v768 = vlaneseq
    %v769 = vshrl.u32 %v768, 7
    %v770 = vsub.s32 0, %v769
    %v771 = vrot.slane %v766, %v770
    %v773 = vmul.f32 %v234, %v771
    %v774 = vmul.f32 %v235, %v771
    %775 = vadd.xlane.f32.xlu0 %v773
    %v776 = vpop.xlane.xlu0 %775
    %777 = vadd.xlane.f32.xlu0 %v774
    %v778 = vpop.xlane.xlu0 %777
    %v779 = vld [vmem:[#allocation2] sm:$0x1]
    %v781 = vlaneseq
    %v782 = vshrl.u32 %v781, 7
    %v783 = vsub.s32 0, %v782
    %v784 = vrot.slane %v779, %v783
    %v786 = vadd.f32 %v776, %v784
    %v787 = vadd.f32 %v778, %v784
    %vm788 = vcmp.gt.f32.partialorder %v786, 0.0
    %vm789 = vcmp.gt.f32.partialorder %v787, 0.0
    %v790 = vmul.f32 %v786, 0.01
    %v791 = vmul.f32 %v787, 0.01
    %v792 = vsel %vm788, %v786, %v790
    %v793 = vsel %vm789, %v787, %v791
    %vm794 = vcmp.eq.s32.totalorder %v730, 0
    %vm795 = vcmp.eq.s32.totalorder %v730, 1
    %v796 = vsel %vm795, %v762, 0.0
    %v797 = vsel %vm795, %v763, 0.0
    %799 = vset.pattern.permute.xlu0 0
    %800 = vperm.xlu0 %799, %v792
    %v801 = vpop.permute.xlu0 %800
    %804 = vset.pattern.permute.xlu0 0
    %805 = vperm.xlu0 %804, %v793
    %v806 = vpop.permute.xlu0 %805
    %v808 = vsel %vm794, %v801, %v796
    %v809 = vsel %vm794, %v806, %v797
    %810 = vst [vmem:[#allocation13] sm:$0xff] %v808
    %811 = vst [vmem:[#allocation13 + $0x8] sm:$0xff] %v809
    // Predicated region
    $region62: #{tpu_custom_call.1} parent=1 // pred_check
      _
    $region63: #{tpu_custom_call.1} parent=1 // pred_check_branch
      %813 = sbr.rel (0) target = $region65
    $region64: #{tpu_custom_call.1} parent=1 // pred_region
      %s815 = ssub.s32 256, 256
      %816 = vsyncadd [#allocation5], %s815
      %s817 = sshll.u32 [#allocation12], 4
      %s818 = int_to_ptr.vmem [resolvable:$true] %s817
      %823 = dma.vmem_to_hbm [thread:$0]  %s818, 256, %s10, [#allocation5], 128, 128, 8
    $region65: #{tpu_custom_call.1} parent=1 // pred_fallthru
      _
    // Predicated region
    $region66: #{tpu_custom_call.1} parent=1 // pred_check
      _
    $region67: #{tpu_custom_call.1} parent=1 // pred_check_branch
      %825 = sbr.rel (0) target = $region69
    $region68: #{tpu_custom_call.1} parent=1 // pred_region
      %s827 = ssub.s32 256, 256
      %828 = vsyncadd [#allocation14], %s827
      %s829 = sshll.u32 [#allocation13], 4
      %s830 = int_to_ptr.vmem [resolvable:$true] %s829
      %835 = dma.vmem_to_hbm [thread:$0]  %s830, 256, %s11, [#allocation14], 128, 128, 8
    $region69: #{tpu_custom_call.1} parent=1 // pred_fallthru
      _
    // Predicated region
    $region70: #{tpu_custom_call.1} parent=1 // pred_check
      _
    $region71: #{tpu_custom_call.1} parent=1 // pred_check_branch
      %837 = sbr.rel (0) target = $region73
    $region72: #{tpu_custom_call.1} parent=1 // pred_region
      %838 = dma.done [#allocation5], 256
    $region73: #{tpu_custom_call.1} parent=1 // pred_fallthru
      _
    // Predicated region
    $region74: #{tpu_custom_call.1} parent=1 // pred_check
      _
    $region75: #{tpu_custom_call.1} parent=1 // pred_check_branch
      %840 = sbr.rel (0) target = $region77
    $region76: #{tpu_custom_call.1} parent=1 // pred_region
      %841 = dma.done [#allocation14], 256
    $region77: #{tpu_custom_call.1} parent=1 // pred_fallthru
      _
    %842 = vsyncpa [#allocation4], 1
    %843 = vsyncpa [#allocation7], 1
    %844 = vsyncpa [#allocation10], 1
    %845 = vsyncpa [#allocation5], 1
    %846 = vsyncpa [#allocation14], 1

</llo_original>
